<compile_context>
chip_gen: v7x
topology: tpu7x:2x2x1
jax: 0.10.0
libtpu: 0.0.40
codegen_flags: <defaults>
</compile_context>

<pallas_src>
import jax
import jax.numpy as jnp
from jax.experimental import pallas as pl
from jax.experimental.pallas import tpu as pltpu


def attention_kernel(q_ref, wa_ref, key_ref, mask_ref, val_ref, ba_ref,
                     ct_ref, att_ref):
    f32 = jnp.float32

    # tanh(ctx_key + q): [B_blk, S, Da]  (upcast to f32 -> EUP tanh)
    t = jnp.tanh(key_ref[...].astype(f32) + q_ref[...][:, None, :])

    # fc_attention: contract over Da (lane axis) -> [B_blk, S]
    # (VPU multiply + XLU lane reduce; avoids a width-1 MXU push)
    score = jnp.sum(t * wa_ref[...], axis=-1) + ba_ref[0]

    # Per-batch max.  The subtracted constant is uniform within each batch, so
    # it cancels exactly in the per-batch normalization below and results match
    # torch's global .max() semantics.
    score = score - jnp.max(score, axis=-1, keepdims=True)

    # masked exp and per-batch normalization
    e = jnp.exp(score) * mask_ref[...].astype(f32)        # [B_blk, S]
    denom = jnp.sum(e, axis=-1, keepdims=True) + 1e-10    # [B_blk, 1]
    att = e / denom                                       # exact divide
    att_ref[...] = att

    # context vector: ct[b, c] = sum_s val[b, c, s] * att[b, s]  -> [B_blk, C]
    ct_ref[...] = jnp.sum(val_ref[...].astype(f32) * att[:, None, :], axis=-1)


def attention_forward(ctx_val, ctx_key, ctx_mask, ht_query, w_query, w_att,
                      b_att, *, stream_dtype=jnp.bfloat16):
    B, C, H, W = ctx_val.shape
    N, Da = w_query.shape
    S = H * W
    f32 = jnp.float32

    # Batch block: fill vreg sublanes / amortize grid-step overhead while
    # keeping the second-to-last block dim legal (== full B or a multiple of 8).
    if B % 8 == 0:
        b_blk = 8
    elif B <= 8:
        b_blk = B
    else:
        b_blk = 1
    grid = (B // b_blk,)

    # ---- wrapper prep: free reshapes + dtype casts only (no transpose / pad) ----
    key_r = ctx_key.reshape(B, S, Da).astype(stream_dtype)   # [B, S, Da]
    val_r = ctx_val.reshape(B, C, S).astype(stream_dtype)    # [B, C, S]
    mask_r = ctx_mask.reshape(B, S).astype(stream_dtype)     # [B, S] (0/1, exact in bf16)
    # fc_query hoisted out of the kernel: one [B,N]x[N,Da] GEMM
    q_all = jnp.dot(ht_query.astype(f32), w_query.astype(f32))   # [B, Da]
    wa = w_att.astype(f32)                                    # [1, Da]   (resident)
    ba = b_att.astype(f32)                                    # [1]       (SMEM scalar)

    in_bytes = (key_r.size * key_r.dtype.itemsize
                + val_r.size * val_r.dtype.itemsize
                + mask_r.size * mask_r.dtype.itemsize
                + q_all.size * 4 + wa.size * 4 + ba.size * 4)
    cost = pl.CostEstimate(
        flops=int(B * (3 * S * Da + 2 * C * S + 6 * S)),
        transcendentals=int(B * S * (Da + 1)),          # tanh + exp
        bytes_accessed=int(in_bytes + 4 * B * (C + S)),
    )

    ct, att = pl.pallas_call(
        attention_kernel,
        out_shape=(jax.ShapeDtypeStruct((B, C), f32),
                   jax.ShapeDtypeStruct((B, S), f32)),
        grid=grid,
        in_specs=[
            pl.BlockSpec((b_blk, Da), lambda i: (i, 0)),        # q = ht @ Wq
            pl.BlockSpec((1, Da), lambda i: (0, 0)),            # w_att (resident)
            pl.BlockSpec((b_blk, S, Da), lambda i: (i, 0, 0)),  # ctx_key (pipelined)
            pl.BlockSpec((b_blk, S), lambda i: (i, 0)),         # ctx_mask
            pl.BlockSpec((b_blk, C, S), lambda i: (i, 0, 0)),   # ctx_val (pipelined)
            pl.BlockSpec(memory_space=pltpu.MemorySpace.SMEM),  # b_att scalar
        ],
        out_specs=(
            pl.BlockSpec((b_blk, C), lambda i: (i, 0)),         # ct  (lane-dense rows)
            pl.BlockSpec((b_blk, S), lambda i: (i, 0)),         # attention_score
        ),
        compiler_params=pltpu.CompilerParams(
            dimension_semantics=("parallel",),     # 2 TCs on v7x when grid >= 2
            vmem_limit_bytes=48 * 1024 * 1024,     # fits v7x's 64 MiB/TC with headroom
        ),
        cost_estimate=cost,
    )(q_all, wa, key_r, mask_r, val_r, ba)

    return ct, att.reshape(B, H, W)


def attention_reference(ctx_val, ctx_key, ctx_mask, ht_query, w_query, w_att, b_att):
    # Pure-JAX reference with the exact torch semantics (global max).
    q = ht_query @ w_query
    t = jnp.tanh(ctx_key + q[:, None, None, :])
    score = jnp.sum(t * w_att[0][None, None, None, :], axis=-1) + b_att[0]
    score = score - jnp.max(score)
    e = jnp.exp(score) * ctx_mask
    att = e / (jnp.sum(e, axis=(1, 2), keepdims=True) + 1e-10)
    ct = jnp.sum(ctx_val * att[:, None, :, :], axis=(2, 3))
    return ct, att


if __name__ == "__main__":
    # small, module-consistent shapes
    B, C, H, W = 2, 4, 8, 8
    N, Da = 32, 32     # params['n'], params['dim_attention']

    key = jax.random.PRNGKey(0)
    k1, k2, k3, k4, k5, k6, k7 = jax.random.split(key, 7)

    ctx_val = jax.random.normal(k1, (B, C, H, W), dtype=jnp.float32)
    ctx_key = jax.random.normal(k2, (B, H, W, Da), dtype=jnp.float32)
    ctx_mask = (jax.random.uniform(k3, (B, H, W)) > 0.2).astype(jnp.float32)
    ht_query = jax.random.normal(k4, (B, N), dtype=jnp.float32)

    # deterministic synthetic parameters (shapes follow nn.Linear in __init__)
    w_query = 0.1 * jax.random.normal(k5, (N, Da), dtype=jnp.float32)   # fc_query.weight.T
    w_att = 0.1 * jax.random.normal(k6, (1, Da), dtype=jnp.float32)     # fc_attention.weight
    b_att = 0.1 * jax.random.normal(k7, (1,), dtype=jnp.float32)        # fc_attention.bias

    ct_ref, att_ref = attention_reference(ctx_val, ctx_key, ctx_mask, ht_query,
                                          w_query, w_att, b_att)

    # Exact-mode check (f32 streaming): must match the torch-semantics reference.
    ct_f32, att_f32 = attention_forward(ctx_val, ctx_key, ctx_mask, ht_query,
                                        w_query, w_att, b_att,
                                        stream_dtype=jnp.float32)
    jax.block_until_ready((ct_f32, att_f32))
    assert jnp.allclose(ct_f32, ct_ref, atol=1e-4, rtol=1e-4)
    assert jnp.allclose(att_f32, att_ref, atol=1e-4, rtol=1e-4)

    # Performance mode (bf16 over HBM, f32 compute): small quantization budget.
    ct, att = attention_forward(ctx_val, ctx_key, ctx_mask, ht_query,
                                w_query, w_att, b_att,
                                stream_dtype=jnp.bfloat16)
    jax.block_until_ready((ct, att))
    assert jnp.allclose(ct, ct_ref, atol=2e-2, rtol=2e-2)
    assert jnp.allclose(att, att_ref, atol=2e-2, rtol=2e-2)

    print("KERNEL_OK")
</pallas_src>

<mosaic_0001>
module attributes {stable_mosaic.version = 11 : i64} {
  func.func @attention_kernel(%arg0: i32, %arg1: memref<2x32xf32, #tpu.memory_space<vmem>>, %arg2: memref<1x32xf32, #tpu.memory_space<vmem>>, %arg3: memref<2x64x32xf32, #tpu.memory_space<vmem>>, %arg4: memref<2x64xf32, #tpu.memory_space<vmem>>, %arg5: memref<2x4x64xf32, #tpu.memory_space<vmem>>, %arg6: memref<1xf32, #tpu.memory_space<smem>>, %arg7: memref<2x4xf32, #tpu.memory_space<vmem>>, %arg8: memref<2x64xf32, #tpu.memory_space<vmem>>) attributes {dimension_semantics = [#tpu.dimension_semantics<parallel>], iteration_bounds = array<i64: 1>, scalar_prefetch = 0 : i64, scratch_operands = 0 : i64, tpu.core_type = #tpu.core_type<tc>, window_params = [{transform_indices = @transform_0, window_bounds = array<i64: 2, 32>}, {pipeline_mode = #tpu.pipeline_mode<synchronous>, transform_indices = @transform_1, window_bounds = array<i64: 1, 32>}, {transform_indices = @transform_2, window_bounds = array<i64: 2, 64, 32>}, {transform_indices = @transform_3, window_bounds = array<i64: 2, 64>}, {transform_indices = @transform_4, window_bounds = array<i64: 2, 4, 64>}, {transform_indices = @transform_5, window_bounds = array<i64: 1>}, {transform_indices = @transform_6, window_bounds = array<i64: 2, 4>}, {transform_indices = @transform_7, window_bounds = array<i64: 2, 64>}]} {
    %c0 = arith.constant 0 : index
    %c0_0 = arith.constant 0 : index
    %c0_1 = arith.constant 0 : index
    %0 = vector.load %arg3[%c0, %c0_0, %c0_1] : memref<2x64x32xf32, #tpu.memory_space<vmem>>, vector<2x64x32xf32>
    %c0_2 = arith.constant 0 : index
    %c0_3 = arith.constant 0 : index
    %1 = vector.load %arg1[%c0_2, %c0_3] : memref<2x32xf32, #tpu.memory_space<vmem>>, vector<2x32xf32>
    %2 = vector.shape_cast %1 : vector<2x32xf32> to vector<2x1x32xf32>
    %3 = vector.broadcast %2 : vector<2x1x32xf32> to vector<2x64x32xf32>
    %4 = arith.addf %0, %3 : vector<2x64x32xf32>
    %5 = math.tanh %4 : vector<2x64x32xf32>
    %c0_4 = arith.constant 0 : index
    %c0_5 = arith.constant 0 : index
    %6 = vector.load %arg2[%c0_4, %c0_5] : memref<1x32xf32, #tpu.memory_space<vmem>>, vector<1x32xf32>
    %7 = vector.shape_cast %6 : vector<1x32xf32> to vector<1x1x32xf32>
    %8 = vector.broadcast %7 : vector<1x1x32xf32> to vector<2x64x32xf32>
    %9 = arith.mulf %5, %8 : vector<2x64x32xf32>
    %cst = arith.constant dense<0.000000e+00> : vector<2x64xf32>
    %10 = vector.multi_reduction <add>, %9, %cst [2] : vector<2x64x32xf32> to vector<2x64xf32>
    %c0_6 = arith.constant 0 : index
    %11 = memref.load %arg6[%c0_6] : memref<1xf32, #tpu.memory_space<smem>>
    %12 = vector.broadcast %11 : f32 to vector<2x64xf32>
    %13 = arith.addf %10, %12 : vector<2x64xf32>
    %cst_7 = arith.constant dense<0xFF800000> : vector<2xf32>
    %14 = vector.multi_reduction <maximumf>, %13, %cst_7 [1] : vector<2x64xf32> to vector<2xf32>
    %15 = vector.shape_cast %14 : vector<2xf32> to vector<2x1xf32>
    %16 = vector.broadcast %15 : vector<2x1xf32> to vector<2x64xf32>
    %17 = arith.subf %13, %16 : vector<2x64xf32>
    %18 = math.exp %17 : vector<2x64xf32>
    %c0_8 = arith.constant 0 : index
    %c0_9 = arith.constant 0 : index
    %19 = vector.load %arg4[%c0_8, %c0_9] : memref<2x64xf32, #tpu.memory_space<vmem>>, vector<2x64xf32>
    %20 = arith.mulf %18, %19 : vector<2x64xf32>
    %cst_10 = arith.constant dense<0.000000e+00> : vector<2xf32>
    %21 = vector.multi_reduction <add>, %20, %cst_10 [1] : vector<2x64xf32> to vector<2xf32>
    %22 = vector.shape_cast %21 : vector<2xf32> to vector<2x1xf32>
    %cst_11 = arith.constant 1.000000e-10 : f32
    %23 = vector.broadcast %cst_11 : f32 to vector<2x1xf32>
    %24 = arith.addf %22, %23 : vector<2x1xf32>
    %25 = vector.broadcast %24 : vector<2x1xf32> to vector<2x64xf32>
    %26 = arith.divf %20, %25 : vector<2x64xf32>
    %c0_12 = arith.constant 0 : index
    %c0_13 = arith.constant 0 : index
    %27 = vector.load %arg8[%c0_12, %c0_13] : memref<2x64xf32, #tpu.memory_space<vmem>>, vector<2x64xf32>
    tpu.vector_store %arg8[%c0_12, %c0_13], %26 {strides = array<i32>} : memref<2x64xf32, #tpu.memory_space<vmem>>, vector<2x64xf32>,
    %c0_14 = arith.constant 0 : index
    %c0_15 = arith.constant 0 : index
    %c0_16 = arith.constant 0 : index
    %28 = vector.load %arg5[%c0_14, %c0_15, %c0_16] : memref<2x4x64xf32, #tpu.memory_space<vmem>>, vector<2x4x64xf32>
    %29 = vector.shape_cast %26 : vector<2x64xf32> to vector<2x1x64xf32>
    %30 = vector.broadcast %29 : vector<2x1x64xf32> to vector<2x4x64xf32>
    %31 = arith.mulf %28, %30 : vector<2x4x64xf32>
    %cst_17 = arith.constant dense<0.000000e+00> : vector<2x4xf32>
    %32 = vector.multi_reduction <add>, %31, %cst_17 [2] : vector<2x4x64xf32> to vector<2x4xf32>
    %c0_18 = arith.constant 0 : index
    %c0_19 = arith.constant 0 : index
    %33 = vector.load %arg7[%c0_18, %c0_19] : memref<2x4xf32, #tpu.memory_space<vmem>>, vector<2x4xf32>
    tpu.vector_store %arg7[%c0_18, %c0_19], %32 {strides = array<i32>} : memref<2x4xf32, #tpu.memory_space<vmem>>, vector<2x4xf32>,
    return
  }
  func.func @transform_0(%arg0: i32) -> (i32, i32) {
    %c0_i32 = arith.constant 0 : i32
    %c0_i32_0 = arith.constant 0 : i32
    return %arg0, %c0_i32 : i32, i32
  }
  func.func @transform_1(%arg0: i32) -> (i32, i32) {
    %c0_i32 = arith.constant 0 : i32
    %c0_i32_0 = arith.constant 0 : i32
    %c0_i32_1 = arith.constant 0 : i32
    return %c0_i32, %c0_i32_0 : i32, i32
  }
  func.func @transform_2(%arg0: i32) -> (i32, i32, i32) {
    %c0_i32 = arith.constant 0 : i32
    %c0_i32_0 = arith.constant 0 : i32
    %c0_i32_1 = arith.constant 0 : i32
    return %arg0, %c0_i32, %c0_i32_0 : i32, i32, i32
  }
  func.func @transform_3(%arg0: i32) -> (i32, i32) {
    %c0_i32 = arith.constant 0 : i32
    %c0_i32_0 = arith.constant 0 : i32
    return %arg0, %c0_i32 : i32, i32
  }
  func.func @transform_4(%arg0: i32) -> (i32, i32, i32) {
    %c0_i32 = arith.constant 0 : i32
    %c0_i32_0 = arith.constant 0 : i32
    %c0_i32_1 = arith.constant 0 : i32
    return %arg0, %c0_i32, %c0_i32_0 : i32, i32, i32
  }
  func.func @transform_5(%arg0: i32) -> i32 {
    %c0_i32 = arith.constant 0 : i32
    %c0_i32_0 = arith.constant 0 : i32
    return %c0_i32 : i32
  }
  func.func @transform_6(%arg0: i32) -> (i32, i32) {
    %c0_i32 = arith.constant 0 : i32
    %c0_i32_0 = arith.constant 0 : i32
    return %arg0, %c0_i32 : i32, i32
  }
  func.func @transform_7(%arg0: i32) -> (i32, i32) {
    %c0_i32 = arith.constant 0 : i32
    %c0_i32_0 = arith.constant 0 : i32
    return %arg0, %c0_i32 : i32, i32
  }
}

</mosaic_0001>

<llo_original>
// kernel: tpu_custom_call.1
$region0: #{tpu_custom_call.1}
  #allocation0 [shape = 'u32[]', space=smem, size = 0x4, offset = 0x4, fixed_abs, tag = 'smem constant byte address 0x4 - core index']
  #allocation1 [shape = 'u32[144,128]{1,0:T(1,128)}', space=vmem, size = 0x12000, scoped, tag = 'internal scratch']
  #allocation2 [shape = 'f32[1]{0:T(128)S(6)}', space=smem, size = 0x200, scoped, tag = 'scoped memory for tpu_custom_call.1']
  %s0 = inlined_call_operand.vmem [shape: f32[2,32], index: 0, kind: input, shape index: {}]
  %s1 = inlined_call_operand.vmem [shape: f32[1,32], index: 1, kind: input, shape index: {}]
  %s2 = inlined_call_operand.vmem [shape: f32[2,64,32], index: 2, kind: input, shape index: {}]
  %s3 = inlined_call_operand.vmem [shape: f32[2,64], index: 3, kind: input, shape index: {}]
  %s4 = inlined_call_operand.vmem [shape: f32[2,4,64], index: 4, kind: input, shape index: {}]
  %s5 = inlined_call_operand.<no memory space> [shape: f32[1], index: 5, kind: input, shape index: {}]
  %s6 = inlined_call_operand.hbm [shape: f32[2,4], index: 6, kind: output, shape index: {0}]
  %s7 = inlined_call_operand.hbm [shape: f32[2,64], index: 7, kind: output, shape index: {1}]
  %8 = xla_tuple %s6, %s7
  %s9 = sld [smem:[#allocation0]]
  $region42: #{tpu_custom_call.1} parent=0
    _
  %s11 = ssub.s32 1, %s9
  %s12 = scalar_select 0, %s11, %s9
  %13 = sst [smem:[#allocation2]] %s5
  $region1: #{tpu_custom_call.1} parent=0
    #allocation3 [shape = 'u8[1024]{0}', space=vmem, size = 0x400, scoped, tag = 'output window, operand 0, single buffered']
    #allocation4 [shape = 's32[1]{0}', space=sflag, size = 0x4, scoped, tag = 'scoped memory for tpu_custom_call.1']
    #allocation5 [shape = 'u8[1024]{0}', space=vmem, size = 0x400, scoped, tag = 'output window, operand 1, single buffered']
    #allocation6 [shape = 's32[1]{0}', space=sflag, size = 0x4, scoped, tag = 'scoped memory for tpu_custom_call.1']
    %14 = vsyncpa [#allocation4], 0
    %15 = vsyncpa [#allocation6], 0
    // Predicated region
    $region2: #{tpu_custom_call.1} parent=1 // pred_check
      _
    $region3: #{tpu_custom_call.1} parent=1 // pred_check_branch
      %17 = sbr.rel (0) target = $region5
    $region4: #{tpu_custom_call.1} parent=1 // pred_region
      _
    $region5: #{tpu_custom_call.1} parent=1 // pred_fallthru
      _
    // Predicated region
    $region6: #{tpu_custom_call.1} parent=1 // pred_check
      _
    $region7: #{tpu_custom_call.1} parent=1 // pred_check_branch
      %19 = sbr.rel (0) target = $region9
    $region8: #{tpu_custom_call.1} parent=1 // pred_region
      _
    $region9: #{tpu_custom_call.1} parent=1 // pred_fallthru
      _
    // Predicated region
    $region10: #{tpu_custom_call.1} parent=1 // pred_check
      _
    $region11: #{tpu_custom_call.1} parent=1 // pred_check_branch
      %21 = sbr.rel (0) target = $region13
    $region12: #{tpu_custom_call.1} parent=1 // pred_region
      _
    $region13: #{tpu_custom_call.1} parent=1 // pred_fallthru
      _
    // Predicated region
    $region14: #{tpu_custom_call.1} parent=1 // pred_check
      _
    $region15: #{tpu_custom_call.1} parent=1 // pred_check_branch
      %23 = sbr.rel (0) target = $region17
    $region16: #{tpu_custom_call.1} parent=1 // pred_region
      _
    $region17: #{tpu_custom_call.1} parent=1 // pred_fallthru
      _
    // Predicated region
    $region18: #{tpu_custom_call.1} parent=1 // pred_check
      _
    $region19: #{tpu_custom_call.1} parent=1 // pred_check_branch
      %25 = sbr.rel (0) target = $region21
    $region20: #{tpu_custom_call.1} parent=1 // pred_region
      _
    $region21: #{tpu_custom_call.1} parent=1 // pred_fallthru
      _
    // Predicated region
    $region22: #{tpu_custom_call.1} parent=1 // pred_check
      _
    $region23: #{tpu_custom_call.1} parent=1 // pred_check_branch
      %27 = sbr.rel (0) target = $region25
    $region24: #{tpu_custom_call.1} parent=1 // pred_region
      _
    $region25: #{tpu_custom_call.1} parent=1 // pred_fallthru
      _
    %v28 = vld [vmem:[%s2] sm:$0xff]
    %v29 = vld [vmem:[%s2 + $0x8] sm:$0xff]
    %v30 = vld [vmem:[%s2 + $0x10] sm:$0xff]
    %v31 = vld [vmem:[%s2 + $0x18] sm:$0xff]
    %v32 = vld [vmem:[%s2 + $0x20] sm:$0xff]
    %v33 = vld [vmem:[%s2 + $0x28] sm:$0xff]
    %v34 = vld [vmem:[%s2 + $0x30] sm:$0xff]
    %v35 = vld [vmem:[%s2 + $0x38] sm:$0xff]
    %v36 = vld [vmem:[%s2 + $0x40] sm:$0xff]
    %v37 = vld [vmem:[%s2 + $0x48] sm:$0xff]
    %v38 = vld [vmem:[%s2 + $0x50] sm:$0xff]
    %v39 = vld [vmem:[%s2 + $0x58] sm:$0xff]
    %v40 = vld [vmem:[%s2 + $0x60] sm:$0xff]
    %v41 = vld [vmem:[%s2 + $0x68] sm:$0xff]
    %v42 = vld [vmem:[%s2 + $0x70] sm:$0xff]
    %v43 = vld [vmem:[%s2 + $0x78] sm:$0xff]
    %v44 = vld [vmem:[%s0] sm:$0x3]
    %v47 = vunpack.c.l.s4 1966171168
    %v48 = vunpack.c.0.s8 %v47
    %v49 = vlaneseq
    %v50 = vshrl.u32 %v49, 7
    %v51 = vsub.s32 %v48, %v50
    %v52 = vrot.slane %v44, %v51
    %v53 = vcombine.high %v52, %v52
    %v55 = vunpack.c.l.s4 1966171168
    %v56 = vunpack.c.0.s8 %v55
    %v57 = vlaneseq
    %v58 = vshrl.u32 %v57, 7
    %v59 = vsub.s32 %v56, %v58
    %v60 = vrot.slane %v52, %v59
    %v62 = vunpack.c.l.s4 1966171168
    %v63 = vunpack.c.0.s8 %v62
    %v64 = vlaneseq
    %v65 = vshrl.u32 %v64, 7
    %v66 = vsub.s32 %v63, %v65
    %v67 = vrot.slane %v53, %v66
    %v68 = vlaneseq
    %v69 = vshrl.u32 %v68, 7
    %v70 = vsub.s32 0, %v69
    %v71 = vrot.slane %v60, %v70
    %v72 = vlaneseq
    %v73 = vshrl.u32 %v72, 7
    %v74 = vsub.s32 0, %v73
    %v75 = vrot.slane %v67, %v74
    %v78 = vadd.f32 %v28, %v71
    %v79 = vadd.f32 %v29, %v71
    %v80 = vadd.f32 %v30, %v71
    %v81 = vadd.f32 %v31, %v71
    %v82 = vadd.f32 %v32, %v71
    %v83 = vadd.f32 %v33, %v71
    %v84 = vadd.f32 %v34, %v71
    %v85 = vadd.f32 %v35, %v71
    %v86 = vadd.f32 %v36, %v75
    %v87 = vadd.f32 %v37, %v75
    %v88 = vadd.f32 %v38, %v75
    %v89 = vadd.f32 %v39, %v75
    %v90 = vadd.f32 %v40, %v75
    %v91 = vadd.f32 %v41, %v75
    %v92 = vadd.f32 %v42, %v75
    %v93 = vadd.f32 %v43, %v75
    %v94 = vtanh.pop %v78
    %v95 = vtanh.pop %v79
    %v96 = vtanh.pop %v80
    %v97 = vtanh.pop %v81
    %v98 = vtanh.pop %v82
    %v99 = vtanh.pop %v83
    %v100 = vtanh.pop %v84
    %v101 = vtanh.pop %v85
    %v102 = vtanh.pop %v86
    %v103 = vtanh.pop %v87
    %v104 = vtanh.pop %v88
    %v105 = vtanh.pop %v89
    %v106 = vtanh.pop %v90
    %v107 = vtanh.pop %v91
    %v108 = vtanh.pop %v92
    %v109 = vtanh.pop %v93
    %v110 = vld [vmem:[%s1] sm:$0x1]
    %v112 = vlaneseq
    %v113 = vshrl.u32 %v112, 7
    %v114 = vsub.s32 0, %v113
    %v115 = vrot.slane %v110, %v114
    %v117 = vmul.f32 %v94, %v115
    %v118 = vmul.f32 %v95, %v115
    %v119 = vmul.f32 %v96, %v115
    %v120 = vmul.f32 %v97, %v115
    %v121 = vmul.f32 %v98, %v115
    %v122 = vmul.f32 %v99, %v115
    %v123 = vmul.f32 %v100, %v115
    %v124 = vmul.f32 %v101, %v115
    %v125 = vmul.f32 %v102, %v115
    %v126 = vmul.f32 %v103, %v115
    %v127 = vmul.f32 %v104, %v115
    %v128 = vmul.f32 %v105, %v115
    %v129 = vmul.f32 %v106, %v115
    %v130 = vmul.f32 %v107, %v115
    %v131 = vmul.f32 %v108, %v115
    %v132 = vmul.f32 %v109, %v115
    %vm133 = vcmask 261120
    %v134 = vsel %vm133, %v117, 0.0
    %135 = vadd.xlane.f32.xlu0 %v134
    %v136 = vpop.xlane.xlu0 %135
    %v137 = vsel %vm133, %v118, 0.0
    %138 = vadd.xlane.f32.xlu0 %v137
    %v139 = vpop.xlane.xlu0 %138
    %v140 = vsel %vm133, %v119, 0.0
    %141 = vadd.xlane.f32.xlu0 %v140
    %v142 = vpop.xlane.xlu0 %141
    %v143 = vsel %vm133, %v120, 0.0
    %144 = vadd.xlane.f32.xlu0 %v143
    %v145 = vpop.xlane.xlu0 %144
    %v146 = vsel %vm133, %v121, 0.0
    %147 = vadd.xlane.f32.xlu0 %v146
    %v148 = vpop.xlane.xlu0 %147
    %v149 = vsel %vm133, %v122, 0.0
    %150 = vadd.xlane.f32.xlu0 %v149
    %v151 = vpop.xlane.xlu0 %150
    %v152 = vsel %vm133, %v123, 0.0
    %153 = vadd.xlane.f32.xlu0 %v152
    %v154 = vpop.xlane.xlu0 %153
    %v155 = vsel %vm133, %v124, 0.0
    %156 = vadd.xlane.f32.xlu0 %v155
    %v157 = vpop.xlane.xlu0 %156
    %v158 = vsel %vm133, %v125, 0.0
    %159 = vadd.xlane.f32.xlu0 %v158
    %v160 = vpop.xlane.xlu0 %159
    %v161 = vsel %vm133, %v126, 0.0
    %162 = vadd.xlane.f32.xlu0 %v161
    %v163 = vpop.xlane.xlu0 %162
    %v164 = vsel %vm133, %v127, 0.0
    %165 = vadd.xlane.f32.xlu0 %v164
    %v166 = vpop.xlane.xlu0 %165
    %v167 = vsel %vm133, %v128, 0.0
    %168 = vadd.xlane.f32.xlu0 %v167
    %v169 = vpop.xlane.xlu0 %168
    %v170 = vsel %vm133, %v129, 0.0
    %171 = vadd.xlane.f32.xlu0 %v170
    %v172 = vpop.xlane.xlu0 %171
    %v173 = vsel %vm133, %v130, 0.0
    %174 = vadd.xlane.f32.xlu0 %v173
    %v175 = vpop.xlane.xlu0 %174
    %v176 = vsel %vm133, %v131, 0.0
    %177 = vadd.xlane.f32.xlu0 %v176
    %v178 = vpop.xlane.xlu0 %177
    %v179 = vsel %vm133, %v132, 0.0
    %180 = vadd.xlane.f32.xlu0 %v179
    %v181 = vpop.xlane.xlu0 %180
    %s182 = sld [smem:[#allocation2]]
    %v183 = vstv %s182
    %v184 = vadd.f32 %v136, %v183
    %v185 = vadd.f32 %v139, %v183
    %v186 = vadd.f32 %v142, %v183
    %v187 = vadd.f32 %v145, %v183
    %v188 = vadd.f32 %v148, %v183
    %v189 = vadd.f32 %v151, %v183
    %v190 = vadd.f32 %v154, %v183
    %v191 = vadd.f32 %v157, %v183
    %v192 = vadd.f32 %v160, %v183
    %v193 = vadd.f32 %v163, %v183
    %v194 = vadd.f32 %v166, %v183
    %v195 = vadd.f32 %v169, %v183
    %v196 = vadd.f32 %v172, %v183
    %v197 = vadd.f32 %v175, %v183
    %v198 = vadd.f32 %v178, %v183
    %v199 = vadd.f32 %v181, %v183
    %v216 = vlaneseq
    %v217 = vand.u32 %v216, 127
    %v218 = vlaneseq
    %v219 = vshrl.u32 %v218, 7
    %v220 = vsub.s32 %v217, %v219
    %v221 = vrot.slane %v184, %v220
    %v222 = vadd.s32 %v217, 4294967288
    %v223 = vlaneseq
    %v224 = vshrl.u32 %v223, 7
    %v225 = vsub.s32 %v222, %v224
    %v226 = vrot.slane %v185, %v225
    %vm227 = vcmask 130112
    %v228 = vsel %vm227, %v226, %v221
    %v229 = vadd.s32 %v217, 4294967280
    %v230 = vlaneseq
    %v231 = vshrl.u32 %v230, 7
    %v232 = vsub.s32 %v229, %v231
    %v233 = vrot.slane %v186, %v232
    %vm234 = vcmask 195712
    %v235 = vsel %vm234, %v233, %v228
    %v236 = vadd.s32 %v217, 4294967272
    %v237 = vlaneseq
    %v238 = vshrl.u32 %v237, 7
    %v239 = vsub.s32 %v236, %v238
    %v240 = vrot.slane %v187, %v239
    %vm241 = vcmask 261312
    %v242 = vsel %vm241, %v240, %v235
    %v243 = vadd.s32 %v217, 4294967264
    %v244 = vlaneseq
    %v245 = vshrl.u32 %v244, 7
    %v246 = vsub.s32 %v243, %v245
    %v247 = vrot.slane %v188, %v246
    %vm248 = vcmask 326912
    %v249 = vsel %vm248, %v247, %v242
    %v250 = vadd.s32 %v217, 4294967256
    %v251 = vlaneseq
    %v252 = vshrl.u32 %v251, 7
    %v253 = vsub.s32 %v250, %v252
    %v254 = vrot.slane %v189, %v253
    %vm255 = vcmask 392512
    %v256 = vsel %vm255, %v254, %v249
    %v257 = vadd.s32 %v217, 4294967248
    %v258 = vlaneseq
    %v259 = vshrl.u32 %v258, 7
    %v260 = vsub.s32 %v257, %v259
    %v261 = vrot.slane %v190, %v260
    %vm262 = vcmask 458112
    %v263 = vsel %vm262, %v261, %v256
    %v264 = vadd.s32 %v217, 4294967240
    %v265 = vlaneseq
    %v266 = vshrl.u32 %v265, 7
    %v267 = vsub.s32 %v264, %v266
    %v268 = vrot.slane %v191, %v267
    %vm269 = vcmask 523712
    %v270 = vsel %vm269, %v268, %v263
    %v271 = vlaneseq
    %v272 = vshrl.u32 %v271, 7
    %v273 = vsub.s32 %v217, %v272
    %v274 = vrot.slane %v192, %v273
    %v275 = vlaneseq
    %v276 = vshrl.u32 %v275, 7
    %v277 = vsub.s32 %v222, %v276
    %v278 = vrot.slane %v193, %v277
    %v279 = vsel %vm227, %v278, %v274
    %v280 = vlaneseq
    %v281 = vshrl.u32 %v280, 7
    %v282 = vsub.s32 %v229, %v281
    %v283 = vrot.slane %v194, %v282
    %v284 = vsel %vm234, %v283, %v279
    %v285 = vlaneseq
    %v286 = vshrl.u32 %v285, 7
    %v287 = vsub.s32 %v236, %v286
    %v288 = vrot.slane %v195, %v287
    %v289 = vsel %vm241, %v288, %v284
    %v290 = vlaneseq
    %v291 = vshrl.u32 %v290, 7
    %v292 = vsub.s32 %v243, %v291
    %v293 = vrot.slane %v196, %v292
    %v294 = vsel %vm248, %v293, %v289
    %v295 = vlaneseq
    %v296 = vshrl.u32 %v295, 7
    %v297 = vsub.s32 %v250, %v296
    %v298 = vrot.slane %v197, %v297
    %v299 = vsel %vm255, %v298, %v294
    %v300 = vlaneseq
    %v301 = vshrl.u32 %v300, 7
    %v302 = vsub.s32 %v257, %v301
    %v303 = vrot.slane %v198, %v302
    %v304 = vsel %vm262, %v303, %v299
    %v305 = vlaneseq
    %v306 = vshrl.u32 %v305, 7
    %v307 = vsub.s32 %v264, %v306
    %v308 = vrot.slane %v199, %v307
    %v309 = vsel %vm269, %v308, %v304
    %vm310 = vcmask 1041409
    %v311 = vsel %vm310, %v309, %v270
    %vm313 = vcmask 517120
    %v314 = vsel %vm313, %v311, -inf
    %315 = vmax.xlane.f32.xlu0 %v314
    %v316 = vpop.xlane.xlu0 %315
    %v318 = vlaneseq
    %v319 = vshrl.u32 %v318, 7
    %v320 = vsub.s32 0, %v319
    %v321 = vrot.slane %v316, %v320
    %v322 = vlaneseq
    %v323 = vshrl.u32 %v322, 7
    %v324 = vsub.s32 1, %v323
    %v325 = vrot.slane %v316, %v324
    %v328 = vsub.f32 %v184, %v321
    %v329 = vsub.f32 %v185, %v321
    %v330 = vsub.f32 %v186, %v321
    %v331 = vsub.f32 %v187, %v321
    %v332 = vsub.f32 %v188, %v321
    %v333 = vsub.f32 %v189, %v321
    %v334 = vsub.f32 %v190, %v321
    %v335 = vsub.f32 %v191, %v321
    %v336 = vsub.f32 %v192, %v325
    %v337 = vsub.f32 %v193, %v325
    %v338 = vsub.f32 %v194, %v325
    %v339 = vsub.f32 %v195, %v325
    %v340 = vsub.f32 %v196, %v325
    %v341 = vsub.f32 %v197, %v325
    %v342 = vsub.f32 %v198, %v325
    %v343 = vsub.f32 %v199, %v325
    %v344 = vmul.f32 %v328, 1.442695
    %v345 = vpow.pop %v344
    %v346 = vmul.f32 %v329, 1.442695
    %v347 = vpow.pop %v346
    %v348 = vmul.f32 %v330, 1.442695
    %v349 = vpow.pop %v348
    %v350 = vmul.f32 %v331, 1.442695
    %v351 = vpow.pop %v350
    %v352 = vmul.f32 %v332, 1.442695
    %v353 = vpow.pop %v352
    %v354 = vmul.f32 %v333, 1.442695
    %v355 = vpow.pop %v354
    %v356 = vmul.f32 %v334, 1.442695
    %v357 = vpow.pop %v356
    %v358 = vmul.f32 %v335, 1.442695
    %v359 = vpow.pop %v358
    %v360 = vmul.f32 %v336, 1.442695
    %v361 = vpow.pop %v360
    %v362 = vmul.f32 %v337, 1.442695
    %v363 = vpow.pop %v362
    %v364 = vmul.f32 %v338, 1.442695
    %v365 = vpow.pop %v364
    %v366 = vmul.f32 %v339, 1.442695
    %v367 = vpow.pop %v366
    %v368 = vmul.f32 %v340, 1.442695
    %v369 = vpow.pop %v368
    %v370 = vmul.f32 %v341, 1.442695
    %v371 = vpow.pop %v370
    %v372 = vmul.f32 %v342, 1.442695
    %v373 = vpow.pop %v372
    %v374 = vmul.f32 %v343, 1.442695
    %v375 = vpow.pop %v374
    %v376 = vld [vmem:[%s3] sm:$0x3]
    %v378 = vlaneseq
    %v379 = vshrl.u32 %v378, 7
    %v380 = vsub.s32 0, %v379
    %v381 = vrot.slane %v376, %v380
    %383 = vbcast.lane.b32.xlu0 %v381, 256
    %v384 = vpop.permute.xlu0 %383
    %s386 = sor.u32 256, 8
    %387 = vbcast.lane.b32.xlu0 %v381, %s386
    %v388 = vpop.permute.xlu0 %387
    %s390 = sor.u32 256, 16
    %391 = vbcast.lane.b32.xlu0 %v381, %s390
    %v392 = vpop.permute.xlu0 %391
    %s394 = sor.u32 256, 24
    %395 = vbcast.lane.b32.xlu0 %v381, %s394
    %v396 = vpop.permute.xlu0 %395
    %s398 = sor.u32 256, 32
    %399 = vbcast.lane.b32.xlu0 %v381, %s398
    %v400 = vpop.permute.xlu0 %399
    %s402 = sor.u32 256, 40
    %403 = vbcast.lane.b32.xlu0 %v381, %s402
    %v404 = vpop.permute.xlu0 %403
    %s406 = sor.u32 256, 48
    %407 = vbcast.lane.b32.xlu0 %v381, %s406
    %v408 = vpop.permute.xlu0 %407
    %s410 = sor.u32 256, 56
    %411 = vbcast.lane.b32.xlu0 %v381, %s410
    %v412 = vpop.permute.xlu0 %411
    %v413 = vlaneseq
    %v414 = vshrl.u32 %v413, 7
    %v415 = vsub.s32 1, %v414
    %v416 = vrot.slane %v376, %v415
    %418 = vbcast.lane.b32.xlu0 %v416, 256
    %v419 = vpop.permute.xlu0 %418
    %s421 = sor.u32 256, 8
    %422 = vbcast.lane.b32.xlu0 %v416, %s421
    %v423 = vpop.permute.xlu0 %422
    %s425 = sor.u32 256, 16
    %426 = vbcast.lane.b32.xlu0 %v416, %s425
    %v427 = vpop.permute.xlu0 %426
    %s429 = sor.u32 256, 24
    %430 = vbcast.lane.b32.xlu0 %v416, %s429
    %v431 = vpop.permute.xlu0 %430
    %s433 = sor.u32 256, 32
    %434 = vbcast.lane.b32.xlu0 %v416, %s433
    %v435 = vpop.permute.xlu0 %434
    %s437 = sor.u32 256, 40
    %438 = vbcast.lane.b32.xlu0 %v416, %s437
    %v439 = vpop.permute.xlu0 %438
    %s441 = sor.u32 256, 48
    %442 = vbcast.lane.b32.xlu0 %v416, %s441
    %v443 = vpop.permute.xlu0 %442
    %s445 = sor.u32 256, 56
    %446 = vbcast.lane.b32.xlu0 %v416, %s445
    %v447 = vpop.permute.xlu0 %446
    %v464 = vmul.f32 %v345, %v384
    %v465 = vmul.f32 %v347, %v388
    %v466 = vmul.f32 %v349, %v392
    %v467 = vmul.f32 %v351, %v396
    %v468 = vmul.f32 %v353, %v400
    %v469 = vmul.f32 %v355, %v404
    %v470 = vmul.f32 %v357, %v408
    %v471 = vmul.f32 %v359, %v412
    %v472 = vmul.f32 %v361, %v419
    %v473 = vmul.f32 %v363, %v423
    %v474 = vmul.f32 %v365, %v427
    %v475 = vmul.f32 %v367, %v431
    %v476 = vmul.f32 %v369, %v435
    %v477 = vmul.f32 %v371, %v439
    %v478 = vmul.f32 %v373, %v443
    %v479 = vmul.f32 %v375, %v447
    %496 = vset.pattern.permute.xlu0 0
    %497 = vperm.xlu0 %496, %v464
    %v498 = vpop.permute.xlu0 %497
    %499 = vset.pattern.permute.xlu0 0
    %500 = vperm.xlu0 %499, %v465
    %v501 = vpop.permute.xlu0 %500
    %502 = vset.pattern.permute.xlu0 0
    %503 = vperm.xlu0 %502, %v466
    %v504 = vpop.permute.xlu0 %503
    %505 = vset.pattern.permute.xlu0 0
    %506 = vperm.xlu0 %505, %v467
    %v507 = vpop.permute.xlu0 %506
    %508 = vset.pattern.permute.xlu0 0
    %509 = vperm.xlu0 %508, %v468
    %v510 = vpop.permute.xlu0 %509
    %511 = vset.pattern.permute.xlu0 0
    %512 = vperm.xlu0 %511, %v469
    %v513 = vpop.permute.xlu0 %512
    %514 = vset.pattern.permute.xlu0 0
    %515 = vperm.xlu0 %514, %v470
    %v516 = vpop.permute.xlu0 %515
    %517 = vset.pattern.permute.xlu0 0
    %518 = vperm.xlu0 %517, %v471
    %v519 = vpop.permute.xlu0 %518
    %520 = vset.pattern.permute.xlu0 0
    %521 = vperm.xlu0 %520, %v472
    %v522 = vpop.permute.xlu0 %521
    %523 = vset.pattern.permute.xlu0 0
    %524 = vperm.xlu0 %523, %v473
    %v525 = vpop.permute.xlu0 %524
    %526 = vset.pattern.permute.xlu0 0
    %527 = vperm.xlu0 %526, %v474
    %v528 = vpop.permute.xlu0 %527
    %529 = vset.pattern.permute.xlu0 0
    %530 = vperm.xlu0 %529, %v475
    %v531 = vpop.permute.xlu0 %530
    %532 = vset.pattern.permute.xlu0 0
    %533 = vperm.xlu0 %532, %v476
    %v534 = vpop.permute.xlu0 %533
    %535 = vset.pattern.permute.xlu0 0
    %536 = vperm.xlu0 %535, %v477
    %v537 = vpop.permute.xlu0 %536
    %538 = vset.pattern.permute.xlu0 0
    %539 = vperm.xlu0 %538, %v478
    %v540 = vpop.permute.xlu0 %539
    %541 = vset.pattern.permute.xlu0 0
    %542 = vperm.xlu0 %541, %v479
    %v543 = vpop.permute.xlu0 %542
    %v544 = vlaneseq
    %v545 = vshrl.u32 %v544, 7
    %v546 = vsub.s32 %v217, %v545
    %v547 = vrot.slane %v498, %v546
    %v548 = vlaneseq
    %v549 = vshrl.u32 %v548, 7
    %v550 = vsub.s32 %v222, %v549
    %v551 = vrot.slane %v501, %v550
    %v552 = vsel %vm227, %v551, %v547
    %v553 = vlaneseq
    %v554 = vshrl.u32 %v553, 7
    %v555 = vsub.s32 %v229, %v554
    %v556 = vrot.slane %v504, %v555
    %v557 = vsel %vm234, %v556, %v552
    %v558 = vlaneseq
    %v559 = vshrl.u32 %v558, 7
    %v560 = vsub.s32 %v236, %v559
    %v561 = vrot.slane %v507, %v560
    %v562 = vsel %vm241, %v561, %v557
    %v563 = vlaneseq
    %v564 = vshrl.u32 %v563, 7
    %v565 = vsub.s32 %v243, %v564
    %v566 = vrot.slane %v510, %v565
    %v567 = vsel %vm248, %v566, %v562
    %v568 = vlaneseq
    %v569 = vshrl.u32 %v568, 7
    %v570 = vsub.s32 %v250, %v569
    %v571 = vrot.slane %v513, %v570
    %v572 = vsel %vm255, %v571, %v567
    %v573 = vlaneseq
    %v574 = vshrl.u32 %v573, 7
    %v575 = vsub.s32 %v257, %v574
    %v576 = vrot.slane %v516, %v575
    %v577 = vsel %vm262, %v576, %v572
    %v578 = vlaneseq
    %v579 = vshrl.u32 %v578, 7
    %v580 = vsub.s32 %v264, %v579
    %v581 = vrot.slane %v519, %v580
    %v582 = vsel %vm269, %v581, %v577
    %v583 = vlaneseq
    %v584 = vshrl.u32 %v583, 7
    %v585 = vsub.s32 %v217, %v584
    %v586 = vrot.slane %v522, %v585
    %v587 = vlaneseq
    %v588 = vshrl.u32 %v587, 7
    %v589 = vsub.s32 %v222, %v588
    %v590 = vrot.slane %v525, %v589
    %v591 = vsel %vm227, %v590, %v586
    %v592 = vlaneseq
    %v593 = vshrl.u32 %v592, 7
    %v594 = vsub.s32 %v229, %v593
    %v595 = vrot.slane %v528, %v594
    %v596 = vsel %vm234, %v595, %v591
    %v597 = vlaneseq
    %v598 = vshrl.u32 %v597, 7
    %v599 = vsub.s32 %v236, %v598
    %v600 = vrot.slane %v531, %v599
    %v601 = vsel %vm241, %v600, %v596
    %v602 = vlaneseq
    %v603 = vshrl.u32 %v602, 7
    %v604 = vsub.s32 %v243, %v603
    %v605 = vrot.slane %v534, %v604
    %v606 = vsel %vm248, %v605, %v601
    %v607 = vlaneseq
    %v608 = vshrl.u32 %v607, 7
    %v609 = vsub.s32 %v250, %v608
    %v610 = vrot.slane %v537, %v609
    %v611 = vsel %vm255, %v610, %v606
    %v612 = vlaneseq
    %v613 = vshrl.u32 %v612, 7
    %v614 = vsub.s32 %v257, %v613
    %v615 = vrot.slane %v540, %v614
    %v616 = vsel %vm262, %v615, %v611
    %v617 = vlaneseq
    %v618 = vshrl.u32 %v617, 7
    %v619 = vsub.s32 %v264, %v618
    %v620 = vrot.slane %v543, %v619
    %v621 = vsel %vm269, %v620, %v616
    %v622 = vsel %vm310, %v621, %v582
    %v624 = vsel %vm313, %v622, 0.0
    %625 = vadd.xlane.f32.xlu0 %v624
    %v626 = vpop.xlane.xlu0 %625
    %v627 = vadd.f32 %v626, 1e-10
    %v629 = vlaneseq
    %v630 = vshrl.u32 %v629, 7
    %v631 = vsub.s32 0, %v630
    %v632 = vrot.slane %v627, %v631
    %v633 = vlaneseq
    %v634 = vshrl.u32 %v633, 7
    %v635 = vsub.s32 1, %v634
    %v636 = vrot.slane %v627, %v635
    %v639 = vrcp.pop %v632
    %v640 = vmul.f32 %v464, %v639
    %v641 = vmul.f32 %v465, %v639
    %v642 = vmul.f32 %v466, %v639
    %v643 = vmul.f32 %v467, %v639
    %v644 = vmul.f32 %v468, %v639
    %v645 = vmul.f32 %v469, %v639
    %v646 = vmul.f32 %v470, %v639
    %v647 = vmul.f32 %v471, %v639
    %v648 = vrcp.pop %v636
    %v649 = vmul.f32 %v472, %v648
    %v650 = vmul.f32 %v473, %v648
    %v651 = vmul.f32 %v474, %v648
    %v652 = vmul.f32 %v475, %v648
    %v653 = vmul.f32 %v476, %v648
    %v654 = vmul.f32 %v477, %v648
    %v655 = vmul.f32 %v478, %v648
    %v656 = vmul.f32 %v479, %v648
    %673 = vset.pattern.permute.xlu0 0
    %674 = vperm.xlu0 %673, %v640
    %v675 = vpop.permute.xlu0 %674
    %676 = vset.pattern.permute.xlu0 0
    %677 = vperm.xlu0 %676, %v641
    %v678 = vpop.permute.xlu0 %677
    %679 = vset.pattern.permute.xlu0 0
    %680 = vperm.xlu0 %679, %v642
    %v681 = vpop.permute.xlu0 %680
    %682 = vset.pattern.permute.xlu0 0
    %683 = vperm.xlu0 %682, %v643
    %v684 = vpop.permute.xlu0 %683
    %685 = vset.pattern.permute.xlu0 0
    %686 = vperm.xlu0 %685, %v644
    %v687 = vpop.permute.xlu0 %686
    %688 = vset.pattern.permute.xlu0 0
    %689 = vperm.xlu0 %688, %v645
    %v690 = vpop.permute.xlu0 %689
    %691 = vset.pattern.permute.xlu0 0
    %692 = vperm.xlu0 %691, %v646
    %v693 = vpop.permute.xlu0 %692
    %694 = vset.pattern.permute.xlu0 0
    %695 = vperm.xlu0 %694, %v647
    %v696 = vpop.permute.xlu0 %695
    %697 = vset.pattern.permute.xlu0 0
    %698 = vperm.xlu0 %697, %v649
    %v699 = vpop.permute.xlu0 %698
    %700 = vset.pattern.permute.xlu0 0
    %701 = vperm.xlu0 %700, %v650
    %v702 = vpop.permute.xlu0 %701
    %703 = vset.pattern.permute.xlu0 0
    %704 = vperm.xlu0 %703, %v651
    %v705 = vpop.permute.xlu0 %704
    %706 = vset.pattern.permute.xlu0 0
    %707 = vperm.xlu0 %706, %v652
    %v708 = vpop.permute.xlu0 %707
    %709 = vset.pattern.permute.xlu0 0
    %710 = vperm.xlu0 %709, %v653
    %v711 = vpop.permute.xlu0 %710
    %712 = vset.pattern.permute.xlu0 0
    %713 = vperm.xlu0 %712, %v654
    %v714 = vpop.permute.xlu0 %713
    %715 = vset.pattern.permute.xlu0 0
    %716 = vperm.xlu0 %715, %v655
    %v717 = vpop.permute.xlu0 %716
    %718 = vset.pattern.permute.xlu0 0
    %719 = vperm.xlu0 %718, %v656
    %v720 = vpop.permute.xlu0 %719
    %v721 = vlaneseq
    %v722 = vshrl.u32 %v721, 7
    %v723 = vsub.s32 %v217, %v722
    %v724 = vrot.slane %v675, %v723
    %v725 = vlaneseq
    %v726 = vshrl.u32 %v725, 7
    %v727 = vsub.s32 %v222, %v726
    %v728 = vrot.slane %v678, %v727
    %v729 = vsel %vm227, %v728, %v724
    %v730 = vlaneseq
    %v731 = vshrl.u32 %v730, 7
    %v732 = vsub.s32 %v229, %v731
    %v733 = vrot.slane %v681, %v732
    %v734 = vsel %vm234, %v733, %v729
    %v735 = vlaneseq
    %v736 = vshrl.u32 %v735, 7
    %v737 = vsub.s32 %v236, %v736
    %v738 = vrot.slane %v684, %v737
    %v739 = vsel %vm241, %v738, %v734
    %v740 = vlaneseq
    %v741 = vshrl.u32 %v740, 7
    %v742 = vsub.s32 %v243, %v741
    %v743 = vrot.slane %v687, %v742
    %v744 = vsel %vm248, %v743, %v739
    %v745 = vlaneseq
    %v746 = vshrl.u32 %v745, 7
    %v747 = vsub.s32 %v250, %v746
    %v748 = vrot.slane %v690, %v747
    %v749 = vsel %vm255, %v748, %v744
    %v750 = vlaneseq
    %v751 = vshrl.u32 %v750, 7
    %v752 = vsub.s32 %v257, %v751
    %v753 = vrot.slane %v693, %v752
    %v754 = vsel %vm262, %v753, %v749
    %v755 = vlaneseq
    %v756 = vshrl.u32 %v755, 7
    %v757 = vsub.s32 %v264, %v756
    %v758 = vrot.slane %v696, %v757
    %v759 = vsel %vm269, %v758, %v754
    %v760 = vlaneseq
    %v761 = vshrl.u32 %v760, 7
    %v762 = vsub.s32 %v217, %v761
    %v763 = vrot.slane %v699, %v762
    %v764 = vlaneseq
    %v765 = vshrl.u32 %v764, 7
    %v766 = vsub.s32 %v222, %v765
    %v767 = vrot.slane %v702, %v766
    %v768 = vsel %vm227, %v767, %v763
    %v769 = vlaneseq
    %v770 = vshrl.u32 %v769, 7
    %v771 = vsub.s32 %v229, %v770
    %v772 = vrot.slane %v705, %v771
    %v773 = vsel %vm234, %v772, %v768
    %v774 = vlaneseq
    %v775 = vshrl.u32 %v774, 7
    %v776 = vsub.s32 %v236, %v775
    %v777 = vrot.slane %v708, %v776
    %v778 = vsel %vm241, %v777, %v773
    %v779 = vlaneseq
    %v780 = vshrl.u32 %v779, 7
    %v781 = vsub.s32 %v243, %v780
    %v782 = vrot.slane %v711, %v781
    %v783 = vsel %vm248, %v782, %v778
    %v784 = vlaneseq
    %v785 = vshrl.u32 %v784, 7
    %v786 = vsub.s32 %v250, %v785
    %v787 = vrot.slane %v714, %v786
    %v788 = vsel %vm255, %v787, %v783
    %v789 = vlaneseq
    %v790 = vshrl.u32 %v789, 7
    %v791 = vsub.s32 %v257, %v790
    %v792 = vrot.slane %v717, %v791
    %v793 = vsel %vm262, %v792, %v788
    %v794 = vlaneseq
    %v795 = vshrl.u32 %v794, 7
    %v796 = vsub.s32 %v264, %v795
    %v797 = vrot.slane %v720, %v796
    %v798 = vsel %vm269, %v797, %v793
    %v799 = vsel %vm310, %v798, %v759
    %801 = vst.msk [vmem:[#allocation5] sm:$0x3] %vm313, %v799
    %v802 = vld [vmem:[%s4] sm:$0xf]
    %v803 = vld [vmem:[%s4 + $0x4] sm:$0xf]
    %vm804 = vcmask 1042434
    %v805 = vsel %vm804, %v759, %v759
    %vm806 = vcmask 1043459
    %v807 = vsel %vm806, %v759, %v805
    %v808 = vsel %vm804, %v798, %v798
    %v809 = vsel %vm806, %v798, %v808
    %v812 = vmul.f32 %v802, %v807
    %v813 = vmul.f32 %v803, %v809
    %vm814 = vcmask 519168
    %v815 = vsel %vm814, %v812, 0.0
    %816 = vadd.xlane.f32.xlu0 %v815
    %v817 = vpop.xlane.xlu0 %816
    %v818 = vsel %vm814, %v813, 0.0
    %819 = vadd.xlane.f32.xlu0 %v818
    %v820 = vpop.xlane.xlu0 %819
    %v823 = vlaneseq
    %v824 = vshrl.u32 %v823, 7
    %v825 = vsub.s32 %v217, %v824
    %v826 = vrot.slane %v817, %v825
    %v827 = vlaneseq
    %v828 = vshrl.u32 %v827, 7
    %v829 = vsub.s32 %v217, %v828
    %v830 = vrot.slane %v820, %v829
    %v831 = vsel %vm310, %v830, %v826
    %vm833 = vcmask 25600
    %834 = vst.msk [vmem:[#allocation3] sm:$0x3] %vm833, %v831
    // Predicated region
    $region26: #{tpu_custom_call.1} parent=1 // pred_check
      _
    $region27: #{tpu_custom_call.1} parent=1 // pred_check_branch
      %836 = sbr.rel (0) target = $region29
    $region28: #{tpu_custom_call.1} parent=1 // pred_region
      %s838 = ssub.s32 32, 32
      %839 = vsyncadd [#allocation4], %s838
      %s841 = sshll.u32 [#allocation3], 4
      %s842 = int_to_ptr.vmem [resolvable:$true] %s841
      %844 = dma.vmem_to_hbm [thread:$0]  %s842, 32, %s6, [#allocation4]
    $region29: #{tpu_custom_call.1} parent=1 // pred_fallthru
      _
    // Predicated region
    $region30: #{tpu_custom_call.1} parent=1 // pred_check
      _
    $region31: #{tpu_custom_call.1} parent=1 // pred_check_branch
      %846 = sbr.rel (0) target = $region33
    $region32: #{tpu_custom_call.1} parent=1 // pred_region
      %s848 = ssub.s32 32, 32
      %849 = vsyncadd [#allocation6], %s848
      %s851 = sshll.u32 [#allocation5], 4
      %s852 = int_to_ptr.vmem [resolvable:$true] %s851
      %854 = dma.vmem_to_hbm [thread:$0]  %s852, 32, %s7, [#allocation6]
    $region33: #{tpu_custom_call.1} parent=1 // pred_fallthru
      _
    // Predicated region
    $region34: #{tpu_custom_call.1} parent=1 // pred_check
      _
    $region35: #{tpu_custom_call.1} parent=1 // pred_check_branch
      %856 = sbr.rel (0) target = $region37
    $region36: #{tpu_custom_call.1} parent=1 // pred_region
      %857 = dma.done [#allocation4], 32
    $region37: #{tpu_custom_call.1} parent=1 // pred_fallthru
      _
    // Predicated region
    $region38: #{tpu_custom_call.1} parent=1 // pred_check
      _
    $region39: #{tpu_custom_call.1} parent=1 // pred_check_branch
      %859 = sbr.rel (0) target = $region41
    $region40: #{tpu_custom_call.1} parent=1 // pred_region
      %860 = dma.done [#allocation6], 32
    $region41: #{tpu_custom_call.1} parent=1 // pred_fallthru
      _
    %861 = vsyncpa [#allocation4], 1
    %862 = vsyncpa [#allocation6], 1

</llo_original>
